<compile_context>
chip_gen: v6e
topology: v6e:2x2x1
jax: 0.10.0
libtpu: 0.0.40
codegen_flags: <defaults>
</compile_context>

<pallas_src>
import functools
import math

import jax
import jax.numpy as jnp
from jax.experimental import pallas as pl
from jax.experimental.pallas import tpu as pltpu


_LANE = 128
# Per review: per-tile footprint here is tiny, so push tiles far above 512 —
# per-grid-step overhead (~0.35 us) is what dominates at small tiles.
_TILE_CANDIDATES = (8192, 4096, 2048, 1024, 512, 256, 128)


def _round_up(x: int, m: int) -> int:
    return ((x + m - 1) // m) * m


@functools.lru_cache(maxsize=1)
def _vmem_capacity_bytes() -> int:
    """Per-core VMEM capacity; conservative v7x (64 MiB) fallback."""
    try:
        cap = int(pltpu.get_tpu_info().vmem_capacity_bytes)
        if cap > 0:
            return cap
    except Exception:
        pass
    return 64 * 1024 * 1024


def _tile_bytes(bt, in_dim, out_dim, max_width, wb_bytes):
    """Rough resident-VMEM footprint for one batch tile."""
    io = bt * in_dim * 4 + out_dim * bt * 4          # f32 input + output tiles
    act = 4 * max_width * bt * 4                     # ~4 live f32 activation slabs
    return 2 * io + 2 * wb_bytes + act               # 2x = double buffering bound


def _plan_tiling(B, in_dim, out_dim, max_width, wb_bytes, vmem_cap):
    """Return (B_padded, batch_tile)."""
    budget = int(0.7 * vmem_cap)
    max_tile = _LANE
    for t in _TILE_CANDIDATES:                       # descending -> first fit is largest
        if _tile_bytes(t, in_dim, out_dim, max_width, wb_bytes) <= budget:
            max_tile = t
            break
    B128 = _round_up(max(B, 1), _LANE)
    if B128 <= max_tile:
        # Single big block: no per-step overhead (optimal on 1-TC v5e/v6e).
        return B128, B128
    # Multi-step grid: largest VMEM-fitting tile; round the grid up to an even
    # number of steps so both v7x TensorCores get work on the "parallel" axis.
    grid = (B + max_tile - 1) // max_tile
    if grid % 2:
        grid += 1
    return grid * max_tile, max_tile


def _make_mlp_kernel(num_linear: int):
    """Fused MLP + softmax kernel; internal (features, batch) layout."""

    def kernel(*refs):
        # refs = (x_ref, w0, b0, w1, b1, ..., w_{n-1}, b_{n-1}, o_ref)
        x_ref = refs[0]            # (bt, in_dim) f32
        o_ref = refs[-1]           # (out_dim, bt) f32

        x = x_ref[...].astype(jnp.bfloat16)              # (bt, in_dim) bf16
        w0 = refs[1][...]                                # (hid, in_dim) bf16
        b0 = refs[2][...]                                # (hid, 1)      f32
        # First layer as an NT dot (contract last dims): w0 @ x.T without ever
        # materializing x.T in HBM — the wrapper no longer transposes/casts x.
        h = jax.lax.dot_general(
            w0, x, (((1,), (1,)), ((), ())),
            preferred_element_type=jnp.float32) + b0     # (hid, bt) f32
        if num_linear > 1:
            # Activation (ReLU assumed); Dropout(p) is identity in eval mode.
            # TODO(synk): training-mode Dropout (random masking + 1/(1-p)) and
            # non-ReLU activations are not implemented.
            h = jnp.maximum(h, 0.0)

        for i in range(1, num_linear):
            w = refs[1 + 2 * i][...]                     # (out_i, in_i) bf16
            b = refs[2 + 2 * i][...]                     # (out_i, 1)    f32
            h = jnp.dot(w, h.astype(jnp.bfloat16),
                        preferred_element_type=jnp.float32) + b
            if i < num_linear - 1:
                h = jnp.maximum(h, 0.0)

        # Softmax over classes == axis 0 (sublanes); batch stays on the lanes.
        m = jnp.max(h, axis=0, keepdims=True)
        e = jnp.exp(h - m)
        denom = jnp.sum(e, axis=0, keepdims=True)
        o_ref[...] = (e * pl.reciprocal(denom, approx=True)).astype(o_ref.dtype)

    return kernel


def init_params(key, input_dim, output_dim, num_hid_layers, num_hid_units):
    """nn.Linear-style init; weights kept in PyTorch (out_features, in_features) layout."""
    dims = [input_dim] + [num_hid_units] * (num_hid_layers + 1) + [output_dim]
    params = []
    for i in range(len(dims) - 1):
        fan_in, fan_out = dims[i], dims[i + 1]
        key, kw, kb = jax.random.split(key, 3)
        bound = 1.0 / math.sqrt(fan_in)
        w = jax.random.uniform(kw, (fan_out, fan_in), jnp.float32, -bound, bound)
        b = jax.random.uniform(kb, (fan_out, 1), jnp.float32, -bound, bound)
        params.append((w, b))
    return params


@jax.jit
def mlp_forward_T(x, params):
    """Fused MLP forward; returns lane-dense (out_dim, B) f32 softmax probs."""
    B, in_dim = x.shape
    out_dim = params[-1][0].shape[0]
    num_linear = len(params)

    widths = [in_dim] + [w.shape[0] for (w, _) in params]
    wb_bytes = sum(w.size * 2 + b.size * 4 for (w, b) in params)
    vmem_cap = _vmem_capacity_bytes()

    B_padded, batch_tile = _plan_tiling(
        B, in_dim, out_dim, max(widths), wb_bytes, vmem_cap)
    grid = B_padded // batch_tile

    # Pad the batch axis so every tile is 128-aligned and lane dense; padded
    # rows run through harmlessly and are sliced off below.
    if B_padded != B:
        x = jnp.pad(x, ((0, B_padded - B), (0, 0)))

    flat_params = []
    in_specs = [pl.BlockSpec((batch_tile, in_dim), lambda i: (i, 0))]
    for (w, b) in params:
        flat_params += [w.astype(jnp.bfloat16), b.astype(jnp.float32)]
        # Resident (grid-invariant) full-array weight/bias blocks.
        # NOTE: single-buffering them (pipeline_mode=pl.Buffered(1)) was
        # considered per review but skipped — they total only a few KiB here.
        in_specs.append(pl.BlockSpec(w.shape, lambda i: (0, 0)))
        in_specs.append(pl.BlockSpec(b.shape, lambda i: (0, 0)))

    out_spec = pl.BlockSpec((out_dim, batch_tile), lambda i: (0, i))

    footprint = _tile_bytes(batch_tile, in_dim, out_dim, max(widths), wb_bytes)
    # Explicit scoped-VMEM budget with headroom, clamped by the per-generation
    # capacity query (64 MiB/TC on v7x, 128 MiB on v5e/v6e).
    vmem_limit = int(min(int(0.9 * vmem_cap),
                         max(32 * 1024 * 1024, 2 * footprint)))

    outT = pl.pallas_call(
        _make_mlp_kernel(num_linear),
        out_shape=jax.ShapeDtypeStruct((out_dim, B_padded), jnp.float32),
        grid=(grid,),
        in_specs=in_specs,
        out_specs=out_spec,
        compiler_params=pltpu.CompilerParams(
            dimension_semantics=("parallel",),
            vmem_limit_bytes=vmem_limit,
        ),
    )(x, *flat_params)

    return outT[:, :B]


@jax.jit
def mlp_forward(x, params):
    """x: (B, in_dim) f32 -> (B, out_dim) f32 softmax probs (matches the module).

    The trailing .T is a tiny (out_dim, B) transpose; consumers that can accept
    the lane-dense transposed layout should call mlp_forward_T directly."""
    return mlp_forward_T(x, params).T


def reference_forward(x, params):
    """Pure-JAX f32 reference (ReLU act, eval-mode dropout)."""
    h = x
    n = len(params)
    for i, (w, b) in enumerate(params):
        h = h @ w.T + b[:, 0]
        if i < n - 1:
            h = jnp.maximum(h, 0.0)
    return jax.nn.softmax(h, axis=1)


if __name__ == "__main__":
    # Small shapes consistent with the module's forward:
    #   input_dim=16, output_dim=4, num_hid_layers=2, num_hid_units=32, batch=16
    input_dim = 16
    output_dim = 4
    num_hid_layers = 2
    num_hid_units = 32
    batch = 16

    key = jax.random.PRNGKey(0)
    key_x, key_p = jax.random.split(key)
    x = jax.random.normal(key_x, (batch, input_dim), jnp.float32)
    params = init_params(key_p, input_dim, output_dim, num_hid_layers, num_hid_units)

    y = mlp_forward(x, params)
    y = jax.block_until_ready(y)

    y_ref = reference_forward(x, params)
    assert y.shape == (batch, output_dim)
    # Tolerances account for bf16 MXU inputs + approx reciprocal in softmax.
    assert jnp.allclose(jnp.sum(y, axis=1), 1.0, atol=1e-2)
    assert jnp.allclose(y, y_ref, atol=3e-2, rtol=3e-2)

    print("KERNEL_OK")
</pallas_src>

<mosaic_0001>
module attributes {stable_mosaic.version = 11 : i64} {
  func.func @kernel(%arg0: i32, %arg1: memref<128x16xf32, #tpu.memory_space<vmem>>, %arg2: memref<32x16xbf16, #tpu.memory_space<vmem>>, %arg3: memref<32x1xf32, #tpu.memory_space<vmem>>, %arg4: memref<32x32xbf16, #tpu.memory_space<vmem>>, %arg5: memref<32x1xf32, #tpu.memory_space<vmem>>, %arg6: memref<32x32xbf16, #tpu.memory_space<vmem>>, %arg7: memref<32x1xf32, #tpu.memory_space<vmem>>, %arg8: memref<4x32xbf16, #tpu.memory_space<vmem>>, %arg9: memref<4x1xf32, #tpu.memory_space<vmem>>, %arg10: memref<4x128xf32, #tpu.memory_space<vmem>>) attributes {dimension_semantics = [#tpu.dimension_semantics<parallel>], iteration_bounds = array<i64: 1>, scalar_prefetch = 0 : i64, scratch_operands = 0 : i64, tpu.core_type = #tpu.core_type<tc>, window_params = [{transform_indices = @transform_0, window_bounds = array<i64: 128, 16>}, {pipeline_mode = #tpu.pipeline_mode<synchronous>, transform_indices = @transform_1, window_bounds = array<i64: 32, 16>}, {pipeline_mode = #tpu.pipeline_mode<synchronous>, transform_indices = @transform_2, window_bounds = array<i64: 32, 1>}, {pipeline_mode = #tpu.pipeline_mode<synchronous>, transform_indices = @transform_3, window_bounds = array<i64: 32, 32>}, {pipeline_mode = #tpu.pipeline_mode<synchronous>, transform_indices = @transform_4, window_bounds = array<i64: 32, 1>}, {pipeline_mode = #tpu.pipeline_mode<synchronous>, transform_indices = @transform_5, window_bounds = array<i64: 32, 32>}, {pipeline_mode = #tpu.pipeline_mode<synchronous>, transform_indices = @transform_6, window_bounds = array<i64: 32, 1>}, {pipeline_mode = #tpu.pipeline_mode<synchronous>, transform_indices = @transform_7, window_bounds = array<i64: 4, 32>}, {pipeline_mode = #tpu.pipeline_mode<synchronous>, transform_indices = @transform_8, window_bounds = array<i64: 4, 1>}, {transform_indices = @transform_9, window_bounds = array<i64: 4, 128>}]} {
    %c0 = arith.constant 0 : index
    %c0_0 = arith.constant 0 : index
    %0 = vector.load %arg1[%c0, %c0_0] : memref<128x16xf32, #tpu.memory_space<vmem>>, vector<128x16xf32>
    %1 = arith.truncf %0 : vector<128x16xf32> to vector<128x16xbf16>
    %c0_1 = arith.constant 0 : index
    %c0_2 = arith.constant 0 : index
    %2 = vector.load %arg2[%c0_1, %c0_2] : memref<32x16xbf16, #tpu.memory_space<vmem>>, vector<32x16xbf16>
    %c0_3 = arith.constant 0 : index
    %c0_4 = arith.constant 0 : index
    %3 = vector.load %arg3[%c0_3, %c0_4] : memref<32x1xf32, #tpu.memory_space<vmem>>, vector<32x1xf32>
    %cst = arith.constant dense<0.000000e+00> : vector<32x128xf32>
    %4 = tpu.matmul %2, %1, %cst {dimension_numbers = #tpu.dot_dimension_numbers<[1], [1], [0], [0], [0, 0, 1, 0], [], []>} : vector<32x16xbf16>, vector<128x16xbf16>, vector<32x128xf32> -> vector<32x128xf32>
    %5 = vector.broadcast %3 : vector<32x1xf32> to vector<32x128xf32>
    %6 = arith.addf %4, %5 : vector<32x128xf32>
    %cst_5 = arith.constant 0.000000e+00 : f32
    %7 = vector.broadcast %cst_5 : f32 to vector<32x128xf32>
    %8 = arith.maximumf %6, %7 : vector<32x128xf32>
    %c0_6 = arith.constant 0 : index
    %c0_7 = arith.constant 0 : index
    %9 = vector.load %arg4[%c0_6, %c0_7] : memref<32x32xbf16, #tpu.memory_space<vmem>>, vector<32x32xbf16>
    %c0_8 = arith.constant 0 : index
    %c0_9 = arith.constant 0 : index
    %10 = vector.load %arg5[%c0_8, %c0_9] : memref<32x1xf32, #tpu.memory_space<vmem>>, vector<32x1xf32>
    %11 = arith.truncf %8 : vector<32x128xf32> to vector<32x128xbf16>
    %cst_10 = arith.constant dense<0.000000e+00> : vector<32x128xf32>
    %12 = tpu.matmul %9, %11, %cst_10 {dimension_numbers = #tpu.dot_dimension_numbers<[1], [0], [0], [1], [0, 0, 1, 1], [], []>} : vector<32x32xbf16>, vector<32x128xbf16>, vector<32x128xf32> -> vector<32x128xf32>
    %13 = vector.broadcast %10 : vector<32x1xf32> to vector<32x128xf32>
    %14 = arith.addf %12, %13 : vector<32x128xf32>
    %cst_11 = arith.constant 0.000000e+00 : f32
    %15 = vector.broadcast %cst_11 : f32 to vector<32x128xf32>
    %16 = arith.maximumf %14, %15 : vector<32x128xf32>
    %c0_12 = arith.constant 0 : index
    %c0_13 = arith.constant 0 : index
    %17 = vector.load %arg6[%c0_12, %c0_13] : memref<32x32xbf16, #tpu.memory_space<vmem>>, vector<32x32xbf16>
    %c0_14 = arith.constant 0 : index
    %c0_15 = arith.constant 0 : index
    %18 = vector.load %arg7[%c0_14, %c0_15] : memref<32x1xf32, #tpu.memory_space<vmem>>, vector<32x1xf32>
    %19 = arith.truncf %16 : vector<32x128xf32> to vector<32x128xbf16>
    %cst_16 = arith.constant dense<0.000000e+00> : vector<32x128xf32>
    %20 = tpu.matmul %17, %19, %cst_16 {dimension_numbers = #tpu.dot_dimension_numbers<[1], [0], [0], [1], [0, 0, 1, 1], [], []>} : vector<32x32xbf16>, vector<32x128xbf16>, vector<32x128xf32> -> vector<32x128xf32>
    %21 = vector.broadcast %18 : vector<32x1xf32> to vector<32x128xf32>
    %22 = arith.addf %20, %21 : vector<32x128xf32>
    %cst_17 = arith.constant 0.000000e+00 : f32
    %23 = vector.broadcast %cst_17 : f32 to vector<32x128xf32>
    %24 = arith.maximumf %22, %23 : vector<32x128xf32>
    %c0_18 = arith.constant 0 : index
    %c0_19 = arith.constant 0 : index
    %25 = vector.load %arg8[%c0_18, %c0_19] : memref<4x32xbf16, #tpu.memory_space<vmem>>, vector<4x32xbf16>
    %c0_20 = arith.constant 0 : index
    %c0_21 = arith.constant 0 : index
    %26 = vector.load %arg9[%c0_20, %c0_21] : memref<4x1xf32, #tpu.memory_space<vmem>>, vector<4x1xf32>
    %27 = arith.truncf %24 : vector<32x128xf32> to vector<32x128xbf16>
    %cst_22 = arith.constant dense<0.000000e+00> : vector<4x128xf32>
    %28 = tpu.matmul %25, %27, %cst_22 {dimension_numbers = #tpu.dot_dimension_numbers<[1], [0], [0], [1], [0, 0, 1, 1], [], []>} : vector<4x32xbf16>, vector<32x128xbf16>, vector<4x128xf32> -> vector<4x128xf32>
    %29 = vector.broadcast %26 : vector<4x1xf32> to vector<4x128xf32>
    %30 = arith.addf %28, %29 : vector<4x128xf32>
    %cst_23 = arith.constant dense<0xFF800000> : vector<128xf32>
    %31 = vector.multi_reduction <maximumf>, %30, %cst_23 [0] : vector<4x128xf32> to vector<128xf32>
    %32 = vector.shape_cast %31 : vector<128xf32> to vector<1x128xf32>
    %33 = vector.broadcast %32 : vector<1x128xf32> to vector<4x128xf32>
    %34 = arith.subf %30, %33 : vector<4x128xf32>
    %35 = math.exp %34 : vector<4x128xf32>
    %cst_24 = arith.constant dense<0.000000e+00> : vector<128xf32>
    %36 = vector.multi_reduction <add>, %35, %cst_24 [0] : vector<4x128xf32> to vector<128xf32>
    %37 = vector.shape_cast %36 : vector<128xf32> to vector<1x128xf32>
    %38 = tpu.reciprocal %37 {approx = true} : vector<1x128xf32> -> vector<1x128xf32>
    %39 = vector.broadcast %38 : vector<1x128xf32> to vector<4x128xf32>
    %40 = arith.mulf %35, %39 : vector<4x128xf32>
    %c0_25 = arith.constant 0 : index
    %c0_26 = arith.constant 0 : index
    %41 = vector.load %arg10[%c0_25, %c0_26] : memref<4x128xf32, #tpu.memory_space<vmem>>, vector<4x128xf32>
    tpu.vector_store %arg10[%c0_25, %c0_26], %40 {strides = array<i32>} : memref<4x128xf32, #tpu.memory_space<vmem>>, vector<4x128xf32>,
    return
  }
  func.func @transform_0(%arg0: i32) -> (i32, i32) {
    %c0_i32 = arith.constant 0 : i32
    %c0_i32_0 = arith.constant 0 : i32
    return %arg0, %c0_i32 : i32, i32
  }
  func.func @transform_1(%arg0: i32) -> (i32, i32) {
    %c0_i32 = arith.constant 0 : i32
    %c0_i32_0 = arith.constant 0 : i32
    %c0_i32_1 = arith.constant 0 : i32
    return %c0_i32, %c0_i32_0 : i32, i32
  }
  func.func @transform_2(%arg0: i32) -> (i32, i32) {
    %c0_i32 = arith.constant 0 : i32
    %c0_i32_0 = arith.constant 0 : i32
    %c0_i32_1 = arith.constant 0 : i32
    return %c0_i32, %c0_i32_0 : i32, i32
  }
  func.func @transform_3(%arg0: i32) -> (i32, i32) {
    %c0_i32 = arith.constant 0 : i32
    %c0_i32_0 = arith.constant 0 : i32
    %c0_i32_1 = arith.constant 0 : i32
    return %c0_i32, %c0_i32_0 : i32, i32
  }
  func.func @transform_4(%arg0: i32) -> (i32, i32) {
    %c0_i32 = arith.constant 0 : i32
    %c0_i32_0 = arith.constant 0 : i32
    %c0_i32_1 = arith.constant 0 : i32
    return %c0_i32, %c0_i32_0 : i32, i32
  }
  func.func @transform_5(%arg0: i32) -> (i32, i32) {
    %c0_i32 = arith.constant 0 : i32
    %c0_i32_0 = arith.constant 0 : i32
    %c0_i32_1 = arith.constant 0 : i32
    return %c0_i32, %c0_i32_0 : i32, i32
  }
  func.func @transform_6(%arg0: i32) -> (i32, i32) {
    %c0_i32 = arith.constant 0 : i32
    %c0_i32_0 = arith.constant 0 : i32
    %c0_i32_1 = arith.constant 0 : i32
    return %c0_i32, %c0_i32_0 : i32, i32
  }
  func.func @transform_7(%arg0: i32) -> (i32, i32) {
    %c0_i32 = arith.constant 0 : i32
    %c0_i32_0 = arith.constant 0 : i32
    %c0_i32_1 = arith.constant 0 : i32
    return %c0_i32, %c0_i32_0 : i32, i32
  }
  func.func @transform_8(%arg0: i32) -> (i32, i32) {
    %c0_i32 = arith.constant 0 : i32
    %c0_i32_0 = arith.constant 0 : i32
    %c0_i32_1 = arith.constant 0 : i32
    return %c0_i32, %c0_i32_0 : i32, i32
  }
  func.func @transform_9(%arg0: i32) -> (i32, i32) {
    %c0_i32 = arith.constant 0 : i32
    %c0_i32_0 = arith.constant 0 : i32
    return %c0_i32, %arg0 : i32, i32
  }
}

</mosaic_0001>

<llo_original>
// kernel: mlp_forward_T.1
$region0: #{mlp_forward_T.1}
  #allocation0 [shape = 'u32[]', space=smem, size = 0x4, offset = 0x4, fixed_abs, tag = 'smem constant byte address 0x4 - core index']
  #allocation1 [shape = 'u32[144,128]{1,0:T(1,128)}', space=vmem, size = 0x12000, scoped, tag = 'internal scratch']
  %s0 = inlined_call_operand.vmem [shape: f32[128,16], index: 0, kind: input, shape index: {}]
  %s1 = inlined_call_operand.vmem [shape: bf16[32,16], index: 1, kind: input, shape index: {}]
  %s2 = inlined_call_operand.vmem [shape: f32[32,1], index: 2, kind: input, shape index: {}]
  %s3 = inlined_call_operand.vmem [shape: bf16[32,32], index: 3, kind: input, shape index: {}]
  %s4 = inlined_call_operand.vmem [shape: f32[32,1], index: 4, kind: input, shape index: {}]
  %s5 = inlined_call_operand.vmem [shape: bf16[32,32], index: 5, kind: input, shape index: {}]
  %s6 = inlined_call_operand.vmem [shape: f32[32,1], index: 6, kind: input, shape index: {}]
  %s7 = inlined_call_operand.vmem [shape: bf16[4,32], index: 7, kind: input, shape index: {}]
  %s8 = inlined_call_operand.vmem [shape: f32[4,1], index: 8, kind: input, shape index: {}]
  %s9 = inlined_call_operand.hbm [shape: f32[4,128], index: 9, kind: output, shape index: {}]
  %s10 = sld [smem:[#allocation0]]
  $region46: #{mlp_forward_T.1} parent=0
    _
  %s12 = ssub.s32 1, %s10
  %s13 = scalar_select 0, %s12, %s10
  $region1: #{mlp_forward_T.1} parent=0
    #allocation2 [shape = 'u8[2048]{0}', space=vmem, size = 0x800, scoped, tag = 'output window, operand 0, single buffered']
    #allocation3 [shape = 's32[1]{0}', space=sflag, size = 0x4, scoped, tag = 'scoped memory for mlp_forward_T.1']
    %14 = vsyncpa [#allocation3], 0
    // Predicated region
    $region2: #{mlp_forward_T.1} parent=1 // pred_check
      _
    $region3: #{mlp_forward_T.1} parent=1 // pred_check_branch
      %16 = sbr.rel (0) target = $region5
    $region4: #{mlp_forward_T.1} parent=1 // pred_region
      _
    $region5: #{mlp_forward_T.1} parent=1 // pred_fallthru
      _
    // Predicated region
    $region6: #{mlp_forward_T.1} parent=1 // pred_check
      _
    $region7: #{mlp_forward_T.1} parent=1 // pred_check_branch
      %18 = sbr.rel (0) target = $region9
    $region8: #{mlp_forward_T.1} parent=1 // pred_region
      _
    $region9: #{mlp_forward_T.1} parent=1 // pred_fallthru
      _
    // Predicated region
    $region10: #{mlp_forward_T.1} parent=1 // pred_check
      _
    $region11: #{mlp_forward_T.1} parent=1 // pred_check_branch
      %20 = sbr.rel (0) target = $region13
    $region12: #{mlp_forward_T.1} parent=1 // pred_region
      _
    $region13: #{mlp_forward_T.1} parent=1 // pred_fallthru
      _
    // Predicated region
    $region14: #{mlp_forward_T.1} parent=1 // pred_check
      _
    $region15: #{mlp_forward_T.1} parent=1 // pred_check_branch
      %22 = sbr.rel (0) target = $region17
    $region16: #{mlp_forward_T.1} parent=1 // pred_region
      _
    $region17: #{mlp_forward_T.1} parent=1 // pred_fallthru
      _
    // Predicated region
    $region18: #{mlp_forward_T.1} parent=1 // pred_check
      _
    $region19: #{mlp_forward_T.1} parent=1 // pred_check_branch
      %24 = sbr.rel (0) target = $region21
    $region20: #{mlp_forward_T.1} parent=1 // pred_region
      _
    $region21: #{mlp_forward_T.1} parent=1 // pred_fallthru
      _
    // Predicated region
    $region22: #{mlp_forward_T.1} parent=1 // pred_check
      _
    $region23: #{mlp_forward_T.1} parent=1 // pred_check_branch
      %26 = sbr.rel (0) target = $region25
    $region24: #{mlp_forward_T.1} parent=1 // pred_region
      _
    $region25: #{mlp_forward_T.1} parent=1 // pred_fallthru
      _
    // Predicated region
    $region26: #{mlp_forward_T.1} parent=1 // pred_check
      _
    $region27: #{mlp_forward_T.1} parent=1 // pred_check_branch
      %28 = sbr.rel (0) target = $region29
    $region28: #{mlp_forward_T.1} parent=1 // pred_region
      _
    $region29: #{mlp_forward_T.1} parent=1 // pred_fallthru
      _
    // Predicated region
    $region30: #{mlp_forward_T.1} parent=1 // pred_check
      _
    $region31: #{mlp_forward_T.1} parent=1 // pred_check_branch
      %30 = sbr.rel (0) target = $region33
    $region32: #{mlp_forward_T.1} parent=1 // pred_region
      _
    $region33: #{mlp_forward_T.1} parent=1 // pred_fallthru
      _
    // Predicated region
    $region34: #{mlp_forward_T.1} parent=1 // pred_check
      _
    $region35: #{mlp_forward_T.1} parent=1 // pred_check_branch
      %32 = sbr.rel (0) target = $region37
    $region36: #{mlp_forward_T.1} parent=1 // pred_region
      _
    $region37: #{mlp_forward_T.1} parent=1 // pred_fallthru
      _
    %v34 = vld [vmem:[%s0] sm:$0xff]
    %v35 = vld [vmem:[%s0 + $0x8] sm:$0xff]
    %v36 = vld [vmem:[%s0 + $0x10] sm:$0xff]
    %v37 = vld [vmem:[%s0 + $0x18] sm:$0xff]
    %v38 = vld [vmem:[%s0 + $0x20] sm:$0xff]
    %v39 = vld [vmem:[%s0 + $0x28] sm:$0xff]
    %v40 = vld [vmem:[%s0 + $0x30] sm:$0xff]
    %v41 = vld [vmem:[%s0 + $0x38] sm:$0xff]
    %v42 = vld [vmem:[%s0 + $0x40] sm:$0xff]
    %v43 = vld [vmem:[%s0 + $0x48] sm:$0xff]
    %v44 = vld [vmem:[%s0 + $0x50] sm:$0xff]
    %v45 = vld [vmem:[%s0 + $0x58] sm:$0xff]
    %v46 = vld [vmem:[%s0 + $0x60] sm:$0xff]
    %v47 = vld [vmem:[%s0 + $0x68] sm:$0xff]
    %v48 = vld [vmem:[%s0 + $0x70] sm:$0xff]
    %v49 = vld [vmem:[%s0 + $0x78] sm:$0xff]
    %v50 = vpack.c.bf16 %v35, %v34
    %v51 = vpack.c.bf16 %v37, %v36
    %v52 = vpack.c.bf16 %v39, %v38
    %v53 = vpack.c.bf16 %v41, %v40
    %v54 = vpack.c.bf16 %v43, %v42
    %v55 = vpack.c.bf16 %v45, %v44
    %v56 = vpack.c.bf16 %v47, %v46
    %v57 = vpack.c.bf16 %v49, %v48
    %v58 = vld [vmem:[%s1] sm:$0xf]
    %v59 = vld [vmem:[%s1 + $0x4] sm:$0xf]
    %v60 = vld [vmem:[%s1 + $0x8] sm:$0xf]
    %v61 = vld [vmem:[%s1 + $0xc] sm:$0xf]
    %v62 = vld [vmem:[%s2] sm:$0xff]
    %v63 = vld [vmem:[%s2 + $0x8] sm:$0xff]
    %v64 = vld [vmem:[%s2 + $0x10] sm:$0xff]
    %v65 = vld [vmem:[%s2 + $0x18] sm:$0xff]
    %67 = vset.pattern.permute.xlu0 0
    %68 = vperm.xlu0 %67, %v62
    %v69 = vpop.permute.xlu0 %68
    %72 = vset.pattern.permute.xlu0 0
    %73 = vperm.xlu0 %72, %v63
    %v74 = vpop.permute.xlu0 %73
    %77 = vset.pattern.permute.xlu0 0
    %78 = vperm.xlu0 %77, %v64
    %v79 = vpop.permute.xlu0 %78
    %82 = vset.pattern.permute.xlu0 0
    %83 = vperm.xlu0 %82, %v65
    %v84 = vpop.permute.xlu0 %83
    %v90 = vunpack.c.l.b16 %v58
    %v91 = vunpack.c.l.b16 %v59
    %v92 = vunpack.c.l.b16 %v60
    %v93 = vunpack.c.l.b16 %v61
    %v94 = vpack.c.b16 %v91, %v90
    %v95 = vpack.c.b16 %v93, %v92
    %vm96 = vcmask 130048
    %v98 = vsel %vm96, %v94, 0
    %v101 = vsel %vm96, %v95, 0
    %v104 = vsel %vm96, %v50, 0
    %v107 = vsel %vm96, %v51, 0
    %v110 = vsel %vm96, %v52, 0
    %v113 = vsel %vm96, %v53, 0
    %v116 = vsel %vm96, %v54, 0
    %v119 = vsel %vm96, %v55, 0
    %v122 = vsel %vm96, %v56, 0
    %v125 = vsel %vm96, %v57, 0
    %127 = vmatprep.subr.bf16.mxu0 0
    %128 = vmatpush1.bf16.xpose.msra.mxu0 %v125
    %129 = vmatprep.subr.bf16.mxu0 0
    %130 = vmatpush1.bf16.xpose.msra.mxu0 %v122
    %131 = vmatprep.subr.bf16.mxu0 0
    %132 = vmatpush1.bf16.xpose.msra.mxu0 %v119
    %133 = vmatprep.subr.bf16.mxu0 0
    %134 = vmatpush1.bf16.xpose.msra.mxu0 %v116
    %135 = vmatprep.subr.bf16.mxu0 0
    %136 = vmatpush1.bf16.xpose.msra.mxu0 %v113
    %137 = vmatprep.subr.bf16.mxu0 0
    %138 = vmatpush1.bf16.xpose.msra.mxu0 %v110
    %139 = vmatprep.subr.bf16.mxu0 0
    %140 = vmatpush1.bf16.xpose.msra.mxu0 %v107
    %141 = vmatprep.subr.bf16.mxu0 0
    %142 = vmatpush1.bf16.xpose.msra.mxu0 %v104
    %143 = vmatprep.subr.bf16.mxu0 0
    %144 = vmatpush2.bf16.xpose.msra.mxu0 0
    %145 = vmatprep.subr.bf16.mxu0 0
    %146 = vmatpush2.bf16.xpose.msra.mxu0 0
    %147 = vmatprep.subr.bf16.mxu0 0
    %148 = vmatpush2.bf16.xpose.msra.mxu0 0
    %149 = vmatprep.subr.bf16.mxu0 0
    %150 = vmatpush2.bf16.xpose.msra.mxu0 0
    %151 = vmatprep.subr.bf16.mxu0 0
    %152 = vmatpush2.bf16.xpose.msra.mxu0 0
    %153 = vmatprep.subr.bf16.mxu0 0
    %154 = vmatpush2.bf16.xpose.msra.mxu0 0
    %155 = vmatprep.subr.bf16.mxu0 0
    %156 = vmatpush2.bf16.xpose.msra.mxu0 0
    %157 = vmatprep.subr.bf16.mxu0 0
    %158 = vmatpush2.bf16.xpose.msra.mxu0 0
    %159 = vmatprep.mubr.bf16.mxu0 0
    %160 = vmatmul.mubr.bf16.gmra.mxu0 %v98
    %v161 = vpop.f32.mrf.mxu0
    %v162 = vadd.f32 %v69, %v161
    %v163 = vpop.f32.mrf.mxu0
    %v164 = vpop.f32.mrf.mxu0
    %v165 = vadd.f32 %v74, %v164
    %v166 = vpop.f32.mrf.mxu0
    %167 = vmatprep.mubr.bf16.mxu0 0
    %168 = vmatmul.mubr.bf16.gmra.mxu0 %v101
    %v169 = vpop.f32.mrf.mxu0
    %v170 = vadd.f32 %v79, %v169
    %v171 = vpop.f32.mrf.mxu0
    %v172 = vpop.f32.mrf.mxu0
    %v173 = vadd.f32 %v84, %v172
    %v174 = vpop.f32.mrf.mxu0
    %175 = vdwg.mxu0
    %v176 = vmax.f32 %v162, 0.0
    %v177 = vmax.f32 %v165, 0.0
    %v178 = vmax.f32 %v170, 0.0
    %v179 = vmax.f32 %v173, 0.0
    %v180 = vld [vmem:[%s3] sm:$0xf]
    %v181 = vld [vmem:[%s3 + $0x4] sm:$0xf]
    %v182 = vld [vmem:[%s3 + $0x8] sm:$0xf]
    %v183 = vld [vmem:[%s3 + $0xc] sm:$0xf]
    %v184 = vld [vmem:[%s4] sm:$0xff]
    %v185 = vld [vmem:[%s4 + $0x8] sm:$0xff]
    %v186 = vld [vmem:[%s4 + $0x10] sm:$0xff]
    %v187 = vld [vmem:[%s4 + $0x18] sm:$0xff]
    %v188 = vpack.c.bf16 %v177, %v176
    %v189 = vpack.c.bf16 %v179, %v178
    %191 = vset.pattern.permute.xlu0 0
    %192 = vperm.xlu0 %191, %v184
    %v193 = vpop.permute.xlu0 %192
    %196 = vset.pattern.permute.xlu0 0
    %197 = vperm.xlu0 %196, %v185
    %v198 = vpop.permute.xlu0 %197
    %201 = vset.pattern.permute.xlu0 0
    %202 = vperm.xlu0 %201, %v186
    %v203 = vpop.permute.xlu0 %202
    %206 = vset.pattern.permute.xlu0 0
    %207 = vperm.xlu0 %206, %v187
    %v208 = vpop.permute.xlu0 %207
    %v214 = vunpack.c.l.b16 %v180
    %v215 = vunpack.c.l.b16 %v181
    %v216 = vunpack.c.l.b16 %v182
    %v217 = vunpack.c.l.b16 %v183
    %v218 = vpack.c.b16 %v215, %v214
    %v219 = vpack.c.b16 %v217, %v216
    %vm220 = vcmask 261120
    %v222 = vsel %vm220, %v218, 0
    %v225 = vsel %vm220, %v219, 0
    %227 = vmatprep.subr.bf16.mxu0 0
    %228 = vmatpush1.bf16.msra.mxu0 0
    %229 = vmatprep.subr.bf16.mxu0 0
    %230 = vmatpush1.bf16.msra.mxu0 0
    %231 = vmatprep.subr.bf16.mxu0 0
    %232 = vmatpush1.bf16.msra.mxu0 0
    %233 = vmatprep.subr.bf16.mxu0 0
    %234 = vmatpush1.bf16.msra.mxu0 0
    %235 = vmatprep.subr.bf16.mxu0 0
    %236 = vmatpush1.bf16.msra.mxu0 0
    %237 = vmatprep.subr.bf16.mxu0 0
    %238 = vmatpush1.bf16.msra.mxu0 0
    %239 = vmatprep.subr.bf16.mxu0 0
    %240 = vmatpush1.bf16.msra.mxu0 %v189
    %241 = vmatprep.subr.bf16.mxu0 0
    %242 = vmatpush1.bf16.msra.mxu0 %v188
    %243 = vmatprep.subr.bf16.mxu0 0
    %244 = vmatpush2.bf16.msra.mxu0 0
    %245 = vmatprep.subr.bf16.mxu0 0
    %246 = vmatpush2.bf16.msra.mxu0 0
    %247 = vmatprep.subr.bf16.mxu0 0
    %248 = vmatpush2.bf16.msra.mxu0 0
    %249 = vmatprep.subr.bf16.mxu0 0
    %250 = vmatpush2.bf16.msra.mxu0 0
    %251 = vmatprep.subr.bf16.mxu0 0
    %252 = vmatpush2.bf16.msra.mxu0 0
    %253 = vmatprep.subr.bf16.mxu0 0
    %254 = vmatpush2.bf16.msra.mxu0 0
    %255 = vmatprep.subr.bf16.mxu0 0
    %256 = vmatpush2.bf16.msra.mxu0 0
    %257 = vmatprep.subr.bf16.mxu0 0
    %258 = vmatpush2.bf16.msra.mxu0 0
    %259 = vmatprep.mubr.bf16.mxu0 0
    %260 = vmatmul.mubr.bf16.gmra.mxu0 %v222
    %v261 = vpop.f32.mrf.mxu0
    %v262 = vadd.f32 %v193, %v261
    %v263 = vpop.f32.mrf.mxu0
    %v264 = vpop.f32.mrf.mxu0
    %v265 = vadd.f32 %v198, %v264
    %v266 = vpop.f32.mrf.mxu0
    %267 = vmatprep.mubr.bf16.mxu0 0
    %268 = vmatmul.mubr.bf16.gmra.mxu0 %v225
    %v269 = vpop.f32.mrf.mxu0
    %v270 = vadd.f32 %v203, %v269
    %v271 = vpop.f32.mrf.mxu0
    %v272 = vpop.f32.mrf.mxu0
    %v273 = vadd.f32 %v208, %v272
    %v274 = vpop.f32.mrf.mxu0
    %275 = vdwg.mxu0
    %v276 = vmax.f32 %v262, 0.0
    %v277 = vmax.f32 %v265, 0.0
    %v278 = vmax.f32 %v270, 0.0
    %v279 = vmax.f32 %v273, 0.0
    %v280 = vld [vmem:[%s5] sm:$0xf]
    %v281 = vld [vmem:[%s5 + $0x4] sm:$0xf]
    %v282 = vld [vmem:[%s5 + $0x8] sm:$0xf]
    %v283 = vld [vmem:[%s5 + $0xc] sm:$0xf]
    %v284 = vld [vmem:[%s6] sm:$0xff]
    %v285 = vld [vmem:[%s6 + $0x8] sm:$0xff]
    %v286 = vld [vmem:[%s6 + $0x10] sm:$0xff]
    %v287 = vld [vmem:[%s6 + $0x18] sm:$0xff]
    %v288 = vpack.c.bf16 %v277, %v276
    %v289 = vpack.c.bf16 %v279, %v278
    %291 = vset.pattern.permute.xlu0 0
    %292 = vperm.xlu0 %291, %v284
    %v293 = vpop.permute.xlu0 %292
    %296 = vset.pattern.permute.xlu0 0
    %297 = vperm.xlu0 %296, %v285
    %v298 = vpop.permute.xlu0 %297
    %301 = vset.pattern.permute.xlu0 0
    %302 = vperm.xlu0 %301, %v286
    %v303 = vpop.permute.xlu0 %302
    %306 = vset.pattern.permute.xlu0 0
    %307 = vperm.xlu0 %306, %v287
    %v308 = vpop.permute.xlu0 %307
    %v314 = vunpack.c.l.b16 %v280
    %v315 = vunpack.c.l.b16 %v281
    %v316 = vunpack.c.l.b16 %v282
    %v317 = vunpack.c.l.b16 %v283
    %v318 = vpack.c.b16 %v315, %v314
    %v319 = vpack.c.b16 %v317, %v316
    %v321 = vsel %vm220, %v318, 0
    %v324 = vsel %vm220, %v319, 0
    %326 = vmatprep.subr.bf16.mxu0 0
    %327 = vmatpush1.bf16.msra.mxu0 0
    %328 = vmatprep.subr.bf16.mxu0 0
    %329 = vmatpush1.bf16.msra.mxu0 0
    %330 = vmatprep.subr.bf16.mxu0 0
    %331 = vmatpush1.bf16.msra.mxu0 0
    %332 = vmatprep.subr.bf16.mxu0 0
    %333 = vmatpush1.bf16.msra.mxu0 0
    %334 = vmatprep.subr.bf16.mxu0 0
    %335 = vmatpush1.bf16.msra.mxu0 0
    %336 = vmatprep.subr.bf16.mxu0 0
    %337 = vmatpush1.bf16.msra.mxu0 0
    %338 = vmatprep.subr.bf16.mxu0 0
    %339 = vmatpush1.bf16.msra.mxu0 %v289
    %340 = vmatprep.subr.bf16.mxu0 0
    %341 = vmatpush1.bf16.msra.mxu0 %v288
    %342 = vmatprep.subr.bf16.mxu0 0
    %343 = vmatpush2.bf16.msra.mxu0 0
    %344 = vmatprep.subr.bf16.mxu0 0
    %345 = vmatpush2.bf16.msra.mxu0 0
    %346 = vmatprep.subr.bf16.mxu0 0
    %347 = vmatpush2.bf16.msra.mxu0 0
    %348 = vmatprep.subr.bf16.mxu0 0
    %349 = vmatpush2.bf16.msra.mxu0 0
    %350 = vmatprep.subr.bf16.mxu0 0
    %351 = vmatpush2.bf16.msra.mxu0 0
    %352 = vmatprep.subr.bf16.mxu0 0
    %353 = vmatpush2.bf16.msra.mxu0 0
    %354 = vmatprep.subr.bf16.mxu0 0
    %355 = vmatpush2.bf16.msra.mxu0 0
    %356 = vmatprep.subr.bf16.mxu0 0
    %357 = vmatpush2.bf16.msra.mxu0 0
    %358 = vmatprep.mubr.bf16.mxu0 0
    %359 = vmatmul.mubr.bf16.gmra.mxu0 %v321
    %v360 = vpop.f32.mrf.mxu0
    %v361 = vadd.f32 %v293, %v360
    %v362 = vpop.f32.mrf.mxu0
    %v363 = vpop.f32.mrf.mxu0
    %v364 = vadd.f32 %v298, %v363
    %v365 = vpop.f32.mrf.mxu0
    %366 = vmatprep.mubr.bf16.mxu0 0
    %367 = vmatmul.mubr.bf16.gmra.mxu0 %v324
    %v368 = vpop.f32.mrf.mxu0
    %v369 = vadd.f32 %v303, %v368
    %v370 = vpop.f32.mrf.mxu0
    %v371 = vpop.f32.mrf.mxu0
    %v372 = vadd.f32 %v308, %v371
    %v373 = vpop.f32.mrf.mxu0
    %374 = vdwg.mxu0
    %v375 = vmax.f32 %v361, 0.0
    %v376 = vmax.f32 %v364, 0.0
    %v377 = vmax.f32 %v369, 0.0
    %v378 = vmax.f32 %v372, 0.0
    %v379 = vld [vmem:[%s7] sm:$0x3]
    %v380 = vld [vmem:[%s8] sm:$0xf]
    %v381 = vpack.c.bf16 %v376, %v375
    %v382 = vpack.c.bf16 %v378, %v377
    %384 = vset.pattern.permute.xlu0 0
    %385 = vperm.xlu0 %384, %v380
    %v386 = vpop.permute.xlu0 %385
    %v389 = vsel %vm220, %v379, 0
    %391 = vmatprep.subr.bf16.mxu0 0
    %392 = vmatpush1.bf16.msra.mxu0 0
    %393 = vmatprep.subr.bf16.mxu0 0
    %394 = vmatpush1.bf16.msra.mxu0 0
    %395 = vmatprep.subr.bf16.mxu0 0
    %396 = vmatpush1.bf16.msra.mxu0 0
    %397 = vmatprep.subr.bf16.mxu0 0
    %398 = vmatpush1.bf16.msra.mxu0 0
    %399 = vmatprep.subr.bf16.mxu0 0
    %400 = vmatpush1.bf16.msra.mxu0 0
    %401 = vmatprep.subr.bf16.mxu0 0
    %402 = vmatpush1.bf16.msra.mxu0 0
    %403 = vmatprep.subr.bf16.mxu0 0
    %404 = vmatpush1.bf16.msra.mxu0 %v382
    %405 = vmatprep.subr.bf16.mxu0 0
    %406 = vmatpush1.bf16.msra.mxu0 %v381
    %407 = vmatprep.subr.bf16.mxu0 0
    %408 = vmatpush2.bf16.msra.mxu0 0
    %409 = vmatprep.subr.bf16.mxu0 0
    %410 = vmatpush2.bf16.msra.mxu0 0
    %411 = vmatprep.subr.bf16.mxu0 0
    %412 = vmatpush2.bf16.msra.mxu0 0
    %413 = vmatprep.subr.bf16.mxu0 0
    %414 = vmatpush2.bf16.msra.mxu0 0
    %415 = vmatprep.subr.bf16.mxu0 0
    %416 = vmatpush2.bf16.msra.mxu0 0
    %417 = vmatprep.subr.bf16.mxu0 0
    %418 = vmatpush2.bf16.msra.mxu0 0
    %419 = vmatprep.subr.bf16.mxu0 0
    %420 = vmatpush2.bf16.msra.mxu0 0
    %421 = vmatprep.subr.bf16.mxu0 0
    %422 = vmatpush2.bf16.msra.mxu0 0
    %423 = vmatprep.mubr.bf16.mxu0 0
    %424 = vmatmul.mubr.bf16.gmra.mxu0 %v389
    %v425 = vpop.f32.mrf.mxu0
    %v426 = vadd.f32 %v386, %v425
    %v427 = vpop.f32.mrf.mxu0
    %v428 = vpop.f32.mrf.mxu0
    %v429 = vpop.f32.mrf.mxu0
    %430 = vdwg.mxu0
    %vm431 = vcmask 1043456
    %v432 = vsel %vm431, %v426, -inf
    %v433 = vrot.slane %v432, 4
    %v434 = vmax.f32 %v432, %v433
    %v435 = vrot.slane %v434, 2
    %v436 = vmax.f32 %v434, %v435
    %v437 = vrot.slane %v436, 1
    %v438 = vmax.f32 %v436, %v437
    %v439 = vsub.f32 %v426, %v438
    %v440 = vmul.f32 %v439, 1.442695
    %v441 = vpow.pop %v440
    %v442 = vsel %vm431, %v441, 0.0
    %v443 = vrot.slane %v442, 4
    %v444 = vadd.f32 %v442, %v443
    %v445 = vrot.slane %v444, 2
    %v446 = vadd.f32 %v444, %v445
    %v447 = vrot.slane %v446, 1
    %v448 = vadd.f32 %v446, %v447
    %v449 = vrcp.pop %v448
    %v450 = vmul.f32 %v441, %v449
    %451 = vst [vmem:[#allocation2] sm:$0xf] %v450
    // Predicated region
    $region38: #{mlp_forward_T.1} parent=1 // pred_check
      _
    $region39: #{mlp_forward_T.1} parent=1 // pred_check_branch
      %453 = sbr.rel (0) target = $region41
    $region40: #{mlp_forward_T.1} parent=1 // pred_region
      %s455 = ssub.s32 64, 64
      %456 = vsyncadd [#allocation3], %s455
      %s458 = sshll.u32 [#allocation2], 4
      %s459 = int_to_ptr.vmem [resolvable:$true] %s458
      %461 = dma.vmem_to_hbm [thread:$0]  %s459, 64, %s9, [#allocation3]
    $region41: #{mlp_forward_T.1} parent=1 // pred_fallthru
      _
    // Predicated region
    $region42: #{mlp_forward_T.1} parent=1 // pred_check
      _
    $region43: #{mlp_forward_T.1} parent=1 // pred_check_branch
      %463 = sbr.rel (0) target = $region45
    $region44: #{mlp_forward_T.1} parent=1 // pred_region
      %464 = dma.done [#allocation3], 64
    $region45: #{mlp_forward_T.1} parent=1 // pred_fallthru
      _
    %465 = vsyncpa [#allocation3], 1

</llo_original>
